<compile_context>
chip_gen: v7x
topology: tpu7x:2x2x1
jax: 0.10.0
libtpu: 0.0.40
codegen_flags: <defaults>
</compile_context>

<pallas_src>
import jax
import jax.numpy as jnp
from jax.experimental import pallas as pl
from jax.experimental.pallas import tpu as pltpu


# -----------------------------------------------------------------------------
# Kernel: streaming broadcast-multiply on the VPU.
#   x_ref   : (TR, TC) tile of the flattened (B*nH, S*D) activations
#   emb_ref : (1,  TC) matching slice of the flattened rotary table
#   o_ref   : (TR, TC)
# -----------------------------------------------------------------------------
def _rope_mul_kernel(x_ref, emb_ref, o_ref):
    # (1, TC) emb broadcasts over the sublane axis of the (TR, TC) x tile.
    o_ref[...] = x_ref[...] * emb_ref[...]


def make_rope_emb(dim: int, max_seq_len: int = 128) -> jnp.ndarray:
    """Mirrors the PyTorch __init__ buffers: emb = cat(sin(pos*inv_freq), cos(pos*inv_freq))."""
    inv_freq = 1.0 / (10000.0 ** (jnp.arange(0, dim, 2, dtype=jnp.float32) / dim))
    seq_pos = jnp.arange(max_seq_len, dtype=jnp.float32)
    sincos = jnp.einsum("i,j->ij", seq_pos, inv_freq)                    # [max_seq_len, dim//2]
    return jnp.concatenate([jnp.sin(sincos), jnp.cos(sincos)], axis=-1)  # [max_seq_len, dim]


# Padded footprint of the (1, tc) emb block: 8 sublanes x 4 B per lane, per buffer.
_EMB_PAD_BYTES_PER_LANE = 8 * 4


def _vmem_params():
    """Generation-aware (per-block byte target, vmem_limit_bytes)."""
    cap = None
    try:
        cap = getattr(pltpu.get_tpu_info(), "vmem_capacity_bytes", None)
    except Exception:
        cap = None
    if cap is not None and cap >= (100 << 20):
        # v5e / v6e: 128 MiB physical VMEM. 4 buffers x 12 MiB + padded emb << 64 MiB.
        return 12 << 20, 64 << 20
    # v7x (64 MiB per TC) or unknown: stay conservative so double-buffering survives.
    return 4 << 20, 40 << 20


def _sublane_granule(itemsize: int) -> int:
    """Packed-tile sublane granule: 8 for f32, 16 for bf16/f16, 32 for int8/fp8."""
    return 8 * max(1, 4 // max(1, itemsize))


def _pick_tiles(rows: int, cols: int, itemsize: int, block_bytes: int):
    """Pick (TR, TC): legal (8,128)-multiples (or full extents), tall-first, budget-aware."""
    g = _sublane_granule(itemsize)
    row_target = 256  # prefer tall tiles before going wide (fewer steps, smaller emb slab)

    if rows <= row_target:
        tr = rows                                  # full extent: always legal
    else:
        tr = max(g, (row_target // g) * g)         # granule multiple

    # Lane tile sized so x-block + padded emb-block fit the per-block byte budget.
    per_lane = tr * itemsize + _EMB_PAD_BYTES_PER_LANE
    col_budget = max(128, (block_bytes // per_lane) // 128 * 128)

    if cols <= col_budget:
        tc = cols                                  # full extent: always legal, lane-dense
        # Columns fully resident: grow rows toward the budget to cut grid steps further.
        tr_budget = (block_bytes - _EMB_PAD_BYTES_PER_LANE * cols) // max(1, cols * itemsize)
        if tr_budget >= rows:
            tr = rows
        elif tr_budget > tr:
            tr = max(g, (tr_budget // g) * g)
    else:
        tc = col_budget                            # multiple of 128

    return tr, tc


def _rope_pallas(x2: jnp.ndarray, emb_flat: jnp.ndarray, *, donate_x: bool = False) -> jnp.ndarray:
    """x2: (B*nH, S*D); emb_flat: (1, S*D) — both already lane-dense."""
    rows, cols = x2.shape
    block_bytes, vmem_limit = _vmem_params()
    tr, tc = _pick_tiles(rows, cols, x2.dtype.itemsize, block_bytes)

    # Column axis OUTER, row axis INNER: emb block index depends only on the outer
    # index, so it is NOT re-DMA'd across consecutive inner (row) steps.
    grid = (pl.cdiv(cols, tc), pl.cdiv(rows, tr))

    call_kwargs = {}
    if donate_x:
        # Same shape/dtype in and out: reuse the x buffer for the output.
        call_kwargs["input_output_aliases"] = {0: 0}

    return pl.pallas_call(
        _rope_mul_kernel,
        out_shape=jax.ShapeDtypeStruct((rows, cols), x2.dtype),
        grid_spec=pltpu.PrefetchScalarGridSpec(
            num_scalar_prefetch=0,
            grid=grid,
            in_specs=[
                pl.BlockSpec((tr, tc), lambda j, i: (i, j)),   # x slab
                pl.BlockSpec((1, tc), lambda j, i: (0, j)),    # rotary table (outer-only index)
            ],
            out_specs=pl.BlockSpec((tr, tc), lambda j, i: (i, j)),
        ),
        compiler_params=pltpu.CompilerParams(
            # Every output block is independent on both axes -> either axis can be
            # sharded across v7x's 2 TensorCores; no-op on single-TC v5e/v6e.
            dimension_semantics=("parallel", "parallel"),
            vmem_limit_bytes=vmem_limit,
        ),
        **call_kwargs,
    )(x2, emb_flat)


def rotary_positional_embedding(x: jnp.ndarray, emb: jnp.ndarray, *,
                                min_pallas_bytes: int = 32 << 20,
                                donate_x: bool = False) -> jnp.ndarray:
    """x: [B, nH, S, D]; emb: [max_seq_len, D]. Returns x * emb[:S] broadcast over (B, nH)."""
    B, nH, S, D = x.shape
    assert S <= emb.shape[0], f"seq_len {S} exceeds rotary table max_seq_len {emb.shape[0]}"
    assert D == emb.shape[1], f"head_dim {D} != rotary table dim {emb.shape[1]}"

    # Glue (cheap, fused by XLA): slice the table, match dtype, flatten lane-dense.
    # NOTE: for sub-f32 x this casts the f32 table down before the multiply; the output
    # dtype is x.dtype either way, so the difference from f32-accumulated math is in the
    # last bf16 ulp.  # TODO(synk): keep the table in f32 in-kernel if exact parity with
    # a mixed-dtype PyTorch promotion (bf16*f32 -> f32 output) is ever required.
    emb_s = emb[:S, :].astype(x.dtype)

    if x.size * x.dtype.itemsize < min_pallas_bytes:
        # Small inputs: a fused XLA broadcast multiply is already at the HBM roofline;
        # a pallas_call launch + reshape plumbing is pure overhead.
        return x * emb_s[None, None, :, :]

    x2 = x.reshape(B * nH, S * D)
    emb_flat = emb_s.reshape(1, S * D)
    out2 = _rope_pallas(x2, emb_flat, donate_x=donate_x)
    return out2.reshape(B, nH, S, D)


if __name__ == "__main__":
    B, nH, S, D = 2, 4, 8, 32
    max_seq_len = 128

    key = jax.random.PRNGKey(0)
    x = jax.random.normal(key, (B, nH, S, D), dtype=jnp.float32)
    emb = make_rope_emb(D, max_seq_len)

    # Force the Pallas path even at this toy size so the kernel itself is exercised.
    out = rotary_positional_embedding(x, emb, min_pallas_bytes=0)
    out = jax.block_until_ready(out)

    # Correctness check against the plain-JAX reference (mirrors the PyTorch forward).
    ref = x * emb[:S][None, None, :, :]
    assert out.shape == (B, nH, S, D)
    assert jnp.allclose(out, ref, atol=1e-6, rtol=1e-6)

    print("KERNEL_OK")
</pallas_src>

<mosaic_0001>
module attributes {stable_mosaic.version = 11 : i64} {
  func.func @_rope_mul_kernel(%arg0: i32, %arg1: i32, %arg2: memref<8x256xf32, #tpu.memory_space<vmem>>, %arg3: memref<1x256xf32, #tpu.memory_space<vmem>>, %arg4: memref<8x256xf32, #tpu.memory_space<vmem>>) attributes {dimension_semantics = [#tpu.dimension_semantics<parallel>, #tpu.dimension_semantics<parallel>], iteration_bounds = array<i64: 1, 1>, scalar_prefetch = 0 : i64, scratch_operands = 0 : i64, tpu.core_type = #tpu.core_type<tc>, window_params = [{transform_indices = @transform_0, window_bounds = array<i64: 8, 256>}, {transform_indices = @transform_1, window_bounds = array<i64: 1, 256>}, {transform_indices = @transform_2, window_bounds = array<i64: 8, 256>}]} {
    %c0 = arith.constant 0 : index
    %c0_0 = arith.constant 0 : index
    %0 = vector.load %arg2[%c0, %c0_0] : memref<8x256xf32, #tpu.memory_space<vmem>>, vector<8x256xf32>
    %c0_1 = arith.constant 0 : index
    %c0_2 = arith.constant 0 : index
    %1 = vector.load %arg3[%c0_1, %c0_2] : memref<1x256xf32, #tpu.memory_space<vmem>>, vector<1x256xf32>
    %2 = vector.broadcast %1 : vector<1x256xf32> to vector<8x256xf32>
    %3 = arith.mulf %0, %2 : vector<8x256xf32>
    %c0_3 = arith.constant 0 : index
    %c0_4 = arith.constant 0 : index
    %4 = vector.load %arg4[%c0_3, %c0_4] : memref<8x256xf32, #tpu.memory_space<vmem>>, vector<8x256xf32>
    tpu.vector_store %arg4[%c0_3, %c0_4], %3 {strides = array<i32>} : memref<8x256xf32, #tpu.memory_space<vmem>>, vector<8x256xf32>,
    return
  }
  func.func @transform_0(%arg0: i32, %arg1: i32) -> (i32, i32) {
    %c0_i32 = arith.constant 0 : i32
    return %arg1, %arg0 : i32, i32
  }
  func.func @transform_1(%arg0: i32, %arg1: i32) -> (i32, i32) {
    %c0_i32 = arith.constant 0 : i32
    %c0_i32_0 = arith.constant 0 : i32
    return %c0_i32, %arg0 : i32, i32
  }
  func.func @transform_2(%arg0: i32, %arg1: i32) -> (i32, i32) {
    %c0_i32 = arith.constant 0 : i32
    return %arg1, %arg0 : i32, i32
  }
}

</mosaic_0001>

<llo_original>
// kernel: tpu_custom_call.1
$region0: #{tpu_custom_call.1}
  #allocation0 [shape = 'u32[]', space=smem, size = 0x4, offset = 0x4, fixed_abs, tag = 'smem constant byte address 0x4 - core index']
  #allocation1 [shape = 'u32[144,128]{1,0:T(1,128)}', space=vmem, size = 0x12000, scoped, tag = 'internal scratch']
  %s0 = inlined_call_operand.hbm [shape: f32[8,256], index: 0, kind: input, shape index: {}]
  %s1 = inlined_call_operand.vmem [shape: f32[1,256], index: 1, kind: input, shape index: {}]
  %s2 = inlined_call_operand.hbm [shape: f32[8,256], index: 2, kind: output, shape index: {}]
  %s3 = sld [smem:[#allocation0]]
  $region22: #{tpu_custom_call.1} parent=0
    _
  %s5 = ssub.s32 1, %s3
  %s6 = scalar_select 0, %s5, %s3
  $region1: #{tpu_custom_call.1} parent=0
    #allocation2 [shape = 'u8[8192]{0}', space=vmem, size = 0x2000, scoped, tag = 'input window, operand 0, single buffered']
    #allocation3 [shape = 's32[1]{0}', space=sflag, size = 0x4, scoped, tag = 'scoped memory for tpu_custom_call.1']
    #allocation4 [shape = 's32[1]{0}', space=sflag, size = 0x4, scoped, tag = 'scoped memory for tpu_custom_call.1']
    #allocation5 [shape = 'u8[8192]{0}', space=vmem, size = 0x2000, scoped, tag = 'output window, operand 0, single buffered']
    %7 = vsyncpa [#allocation3], 0
    %8 = vsyncpa [#allocation4], 0
    // Predicated region
    $region2: #{tpu_custom_call.1} parent=1 // pred_check
      _
    $region3: #{tpu_custom_call.1} parent=1 // pred_check_branch
      %10 = sbr.rel (0) target = $region5
    $region4: #{tpu_custom_call.1} parent=1 // pred_region
      %s12 = ssub.s32 256, 256
      %13 = vsyncadd [#allocation3], %s12
      %s15 = sshll.u32 [#allocation2], 4
      %s16 = int_to_ptr.vmem [resolvable:$true] %s15
      %18 = dma.hbm_to_vmem [thread:$0]  %s0, 256, %s16, [#allocation3]
    $region5: #{tpu_custom_call.1} parent=1 // pred_fallthru
      _
    // Predicated region
    $region6: #{tpu_custom_call.1} parent=1 // pred_check
      _
    $region7: #{tpu_custom_call.1} parent=1 // pred_check_branch
      %20 = sbr.rel (0) target = $region9
    $region8: #{tpu_custom_call.1} parent=1 // pred_region
      _
    $region9: #{tpu_custom_call.1} parent=1 // pred_fallthru
      _
    // Predicated region
    $region10: #{tpu_custom_call.1} parent=1 // pred_check
      _
    $region11: #{tpu_custom_call.1} parent=1 // pred_check_branch
      %22 = sbr.rel (0) target = $region13
    $region12: #{tpu_custom_call.1} parent=1 // pred_region
      %23 = dma.done [#allocation3], 256
    $region13: #{tpu_custom_call.1} parent=1 // pred_fallthru
      _
    %v24 = vld [vmem:[#allocation2] sm:$0xff]
    %v25 = vld [vmem:[#allocation2 + $0x8] sm:$0xff]
    %v26 = vld [vmem:[%s1] sm:$0x3]
    %v28 = vlaneseq
    %v29 = vshrl.u32 %v28, 7
    %v30 = vsub.s32 0, %v29
    %v31 = vrot.slane %v26, %v30
    %v32 = vlaneseq
    %v33 = vshrl.u32 %v32, 7
    %v34 = vsub.s32 1, %v33
    %v35 = vrot.slane %v26, %v34
    %v38 = vmul.f32 %v24, %v31
    %v39 = vmul.f32 %v25, %v35
    %40 = vst [vmem:[#allocation5] sm:$0xff] %v38
    %41 = vst [vmem:[#allocation5 + $0x8] sm:$0xff] %v39
    // Predicated region
    $region14: #{tpu_custom_call.1} parent=1 // pred_check
      _
    $region15: #{tpu_custom_call.1} parent=1 // pred_check_branch
      %43 = sbr.rel (0) target = $region17
    $region16: #{tpu_custom_call.1} parent=1 // pred_region
      %s45 = ssub.s32 256, 256
      %46 = vsyncadd [#allocation4], %s45
      %s48 = sshll.u32 [#allocation5], 4
      %s49 = int_to_ptr.vmem [resolvable:$true] %s48
      %51 = dma.vmem_to_hbm [thread:$0]  %s49, 256, %s2, [#allocation4]
    $region17: #{tpu_custom_call.1} parent=1 // pred_fallthru
      _
    // Predicated region
    $region18: #{tpu_custom_call.1} parent=1 // pred_check
      _
    $region19: #{tpu_custom_call.1} parent=1 // pred_check_branch
      %53 = sbr.rel (0) target = $region21
    $region20: #{tpu_custom_call.1} parent=1 // pred_region
      %54 = dma.done [#allocation4], 256
    $region21: #{tpu_custom_call.1} parent=1 // pred_fallthru
      _
    %55 = vsyncpa [#allocation3], 1
    %56 = vsyncpa [#allocation4], 1

</llo_original>
